<compile_context>
chip_gen: v5e
topology: v5e:2x2
jax: 0.10.0
libtpu: 0.0.40
codegen_flags: <defaults>
</compile_context>

<pallas_src>
import functools

import jax
import jax.numpy as jnp
from jax import lax
from jax.experimental import pallas as pl
from jax.experimental.pallas import tpu as pltpu


def _round_up(n, m):
    return ((n + m - 1) // m) * m


def _multi_tensorcore_chip():
    """True when one JAX device spans >1 TensorCore (v7x; v4/v5p megacore)."""
    try:
        kind = jax.devices()[0].device_kind.lower()
    except Exception:
        return False
    return any(t in kind for t in ("v4", "v5p", "v7"))


def pack_attention_params(wq, bq, wk, bk, wv, bv, scale, *,
                          mxu_dtype=jnp.bfloat16):
    """ONE-TIME parameter packing -- call once, reuse across forward passes.

    wq/wk/wv: (D, D) pre-transposed (in, out).  bq/bk/bv: (1, D) or (D,).
    scale: (1,) learned scalar (nn.Parameter).  Folds 1/scale into the Wq
    columns and bq entries, pads each q/k/v OUTPUT segment to a multiple of
    128 lanes (contraction dim D is left unpadded), and fuses to one weight.

    Returns (wqkv, bqkv):
      wqkv: (D, 3P) mxu_dtype,   [Wq/scale | Wk | Wv]
      bqkv: (1, 3P) float32,     [bq/scale | bk | bv]
    Padded output columns are exactly zero, so q.k^T and attn@v over P equal
    the unpadded math (padded v columns are never read).
    NOTE: 1/scale shares the reference's divide-by-near-zero hazard.
    """
    D = wq.shape[0]
    P = _round_up(D, 128)
    inv_scale = (1.0 / scale.reshape(())).astype(jnp.float32)

    def pad_w(w):
        return jnp.pad(w.astype(jnp.float32), ((0, 0), (0, P - D)))

    def pad_b(b):
        return jnp.pad(b.astype(jnp.float32).reshape(1, D), ((0, 0), (0, P - D)))

    wqkv = jnp.concatenate([pad_w(wq * inv_scale), pad_w(wk), pad_w(wv)], axis=1)
    bqkv = jnp.concatenate([pad_b(bq * inv_scale), pad_b(bk), pad_b(bv)], axis=1)
    return wqkv.astype(mxu_dtype), bqkv.astype(jnp.float32)


def _attention_kernel(x_ref, wqkv_ref, bqkv_ref, o_ref, *, nb, seq):
    """One grid step processes `nb` batch elements (rows flattened to nb*seq).

    x_ref    : (nb*seq, D)  f32 (cast to MXU dtype in-kernel)
    wqkv_ref : (D, 3P)      MXU dtype (f32 or bf16), [Wq/scale | Wk | Wv]
    bqkv_ref : (1, 3P)      f32, [bq/scale | bk | bv]
    o_ref    : (nb*seq, D)  f32
    """
    D = x_ref.shape[1]
    P = wqkv_ref.shape[1] // 3
    mxu_dt = wqkv_ref.dtype

    # Fused QKV projection for all nb*seq rows: one MXU push, f32 accumulate,
    # f32 bias add (1/scale already folded into the q segment at pack time).
    qkv = jnp.dot(x_ref[...].astype(mxu_dt), wqkv_ref[...],
                  preferred_element_type=jnp.float32) + bqkv_ref[...]  # (nb*S, 3P)

    # Per-batch attention; nb is static so this unrolls (seq-row slices are
    # sublane-aligned for seq a multiple of 8).
    for b in range(nb):
        r0, r1 = b * seq, (b + 1) * seq
        q = qkv[r0:r1, 0:P]                       # (S, P) f32, padded cols = 0
        k = qkv[r0:r1, P:2 * P]                   # (S, P) f32, padded cols = 0
        v = qkv[r0:r1, 2 * P:2 * P + D]           # (S, D) f32 (real columns only)

        # scores = (q/scale) @ k^T without materialising k.T
        # (transposed-RHS contraction: dim 1 of q with dim 1 of k).
        scores = lax.dot_general(
            q.astype(mxu_dt), k.astype(mxu_dt),
            dimension_numbers=(((1,), (1,)), ((), ())),
            preferred_element_type=jnp.float32)   # (S, S)

        # Numerically stable softmax; denominator reciprocal on the EUP slot.
        m = jnp.max(scores, axis=-1, keepdims=True)
        e = jnp.exp(scores - m)
        attn = e * pl.reciprocal(jnp.sum(e, axis=-1, keepdims=True), approx=True)

        out = jnp.dot(attn.astype(mxu_dt), v.astype(mxu_dt),
                      preferred_element_type=jnp.float32)          # (S, D)
        o_ref[pl.ds(r0, seq), :] = out.astype(o_ref.dtype)


def attention_forward(x, wqkv, bqkv, *, parallel_batch=None):
    """x: (B, S, D) f32.  wqkv/bqkv: outputs of pack_attention_params.

    parallel_batch=None auto-selects: grid=(B,) "parallel" on chips whose
    device spans multiple TensorCores (v7x / megacore), grid=(1,) with a
    flattened (B*S, D) projection on single-TC chips (v5e / v6e)."""
    B, S, D = x.shape
    P3 = wqkv.shape[1]
    assert wqkv.shape[0] == D and P3 % (3 * 128) == 0 and bqkv.shape == (1, P3)

    if parallel_batch is None:
        parallel_batch = _multi_tensorcore_chip()
    steps = B if parallel_batch else 1
    nb = B // steps

    x2 = x.reshape(B * S, D)          # contiguous: metadata-only reshape

    kernel = functools.partial(_attention_kernel, nb=nb, seq=S)
    # For large D: add pipeline_mode=pl.Buffered(1) to the constant-index
    # wqkv/bqkv specs and set vmem_limit_bytes (v7x VMEM is 64 MiB).
    out2 = pl.pallas_call(
        kernel,
        out_shape=jax.ShapeDtypeStruct((B * S, D), jnp.float32),
        grid=(steps,),
        in_specs=[
            pl.BlockSpec((nb * S, D), lambda i: (i, 0)),   # this step's rows of x
            pl.BlockSpec((D, P3), lambda i: (0, 0)),       # fused weights (constant)
            pl.BlockSpec((1, P3), lambda i: (0, 0)),       # fused bias (constant)
        ],
        out_specs=pl.BlockSpec((nb * S, D), lambda i: (i, 0)),
        compiler_params=pltpu.CompilerParams(
            dimension_semantics=("parallel",)),            # v7x/megacore: split batches
    )(x2, wqkv, bqkv)
    return out2.reshape(B, S, D)


def reference_forward(x, wq, bq, wk, bk, wv, bv, scale):
    q = x @ wq + bq
    k = x @ wk + bk
    v = x @ wv + bv
    s = jnp.einsum("bqd,bkd->bqk", q, k) / scale.reshape(())
    w = jax.nn.softmax(s, axis=-1)
    return jnp.einsum("bqk,bkd->bqd", w, v)


if __name__ == "__main__":
    B, S, D = 2, 8, 32  # batch, seq, in_dim

    key = jax.random.PRNGKey(0)
    kx, kq, kbq, kk, kbk, kv, kbv = jax.random.split(key, 7)

    # Deterministic synthetic parameters (nn.Linear(in_dim, in_dim) shapes),
    # stored pre-transposed as (D_in, D_out).
    bound = 1.0 / (D ** 0.5)
    x = jax.random.normal(kx, (B, S, D), dtype=jnp.float32)
    wq = jax.random.uniform(kq, (D, D), jnp.float32, -bound, bound)
    bq = jax.random.uniform(kbq, (1, D), jnp.float32, -bound, bound)
    wk = jax.random.uniform(kk, (D, D), jnp.float32, -bound, bound)
    bk = jax.random.uniform(kbk, (1, D), jnp.float32, -bound, bound)
    wv = jax.random.uniform(kv, (D, D), jnp.float32, -bound, bound)
    bv = jax.random.uniform(kbv, (1, D), jnp.float32, -bound, bound)
    # learned nn.Parameter (init 1.0); use a non-unit value to exercise the
    # 1/scale fold into Wq/bq.
    scale = jnp.array([1.25], dtype=jnp.float32)

    ref = reference_forward(x, wq, bq, wk, bk, wv, bv, scale)

    # ---- f32 MXU operands: test both grid variants explicitly (the collapsed
    # grid=(1,) variant is correct on every chip; grid=(B,) is correct too and
    # is what multi-TC chips auto-select). Tolerance covers the approx EUP
    # reciprocal in the softmax denominator.
    wqkv_f32, bqkv_f32 = pack_attention_params(
        wq, bq, wk, bk, wv, bv, scale, mxu_dtype=jnp.float32)
    out_flat = jax.block_until_ready(
        attention_forward(x, wqkv_f32, bqkv_f32, parallel_batch=False))
    out_grid = jax.block_until_ready(
        attention_forward(x, wqkv_f32, bqkv_f32, parallel_batch=True))
    assert out_flat.shape == (B, S, D) and out_grid.shape == (B, S, D)
    assert jnp.allclose(out_flat, ref, atol=5e-3, rtol=5e-3), "f32 (grid=1) mismatch"
    assert jnp.allclose(out_grid, ref, atol=5e-3, rtol=5e-3), "f32 (grid=B) mismatch"

    # ---- bf16 MXU operands, f32 accumulation (default packing; full MXU rate
    # on v5e/v6e/v7x, elementwise/softmax math stays f32), chip-auto grid.
    wqkv_bf16, bqkv_bf16 = pack_attention_params(wq, bq, wk, bk, wv, bv, scale)
    out_bf16 = jax.block_until_ready(attention_forward(x, wqkv_bf16, bqkv_bf16))
    assert out_bf16.shape == (B, S, D)
    assert jnp.allclose(out_bf16, ref, atol=5e-2, rtol=5e-2), "bf16 mismatch"

    print("KERNEL_OK")
</pallas_src>

<mosaic_0001>
module attributes {stable_mosaic.version = 11 : i64} {
  func.func @_attention_kernel(%arg0: i32, %arg1: memref<16x32xf32, #tpu.memory_space<vmem>>, %arg2: memref<32x384xf32, #tpu.memory_space<vmem>>, %arg3: memref<1x384xf32, #tpu.memory_space<vmem>>, %arg4: memref<16x32xf32, #tpu.memory_space<vmem>>) attributes {dimension_semantics = [#tpu.dimension_semantics<parallel>], iteration_bounds = array<i64: 1>, scalar_prefetch = 0 : i64, scratch_operands = 0 : i64, tpu.core_type = #tpu.core_type<tc>, window_params = [{transform_indices = @transform_0, window_bounds = array<i64: 16, 32>}, {pipeline_mode = #tpu.pipeline_mode<synchronous>, transform_indices = @transform_1, window_bounds = array<i64: 32, 384>}, {pipeline_mode = #tpu.pipeline_mode<synchronous>, transform_indices = @transform_2, window_bounds = array<i64: 1, 384>}, {transform_indices = @transform_3, window_bounds = array<i64: 16, 32>}]} {
    %c0 = arith.constant 0 : index
    %c0_0 = arith.constant 0 : index
    %0 = vector.load %arg1[%c0, %c0_0] : memref<16x32xf32, #tpu.memory_space<vmem>>, vector<16x32xf32>
    %c0_1 = arith.constant 0 : index
    %c0_2 = arith.constant 0 : index
    %1 = vector.load %arg2[%c0_1, %c0_2] : memref<32x384xf32, #tpu.memory_space<vmem>>, vector<32x384xf32>
    %cst = arith.constant dense<0.000000e+00> : vector<16x384xf32>
    %2 = tpu.matmul %0, %1, %cst {dimension_numbers = #tpu.dot_dimension_numbers<[1], [0], [0], [1], [0, 0, 1, 1], [], []>} : vector<16x32xf32>, vector<32x384xf32>, vector<16x384xf32> -> vector<16x384xf32>
    %c0_3 = arith.constant 0 : index
    %c0_4 = arith.constant 0 : index
    %3 = vector.load %arg3[%c0_3, %c0_4] : memref<1x384xf32, #tpu.memory_space<vmem>>, vector<1x384xf32>
    %4 = vector.broadcast %3 : vector<1x384xf32> to vector<16x384xf32>
    %5 = arith.addf %2, %4 : vector<16x384xf32>
    %6 = vector.extract_strided_slice %5 {offsets = [0, 0], sizes = [8, 128], strides = [1, 1]} : vector<16x384xf32> to vector<8x128xf32>
    %7 = vector.extract_strided_slice %5 {offsets = [0, 128], sizes = [8, 128], strides = [1, 1]} : vector<16x384xf32> to vector<8x128xf32>
    %8 = vector.extract_strided_slice %5 {offsets = [0, 256], sizes = [8, 32], strides = [1, 1]} : vector<16x384xf32> to vector<8x32xf32>
    %cst_5 = arith.constant dense<0.000000e+00> : vector<8x8xf32>
    %9 = tpu.matmul %6, %7, %cst_5 {dimension_numbers = #tpu.dot_dimension_numbers<[1], [1], [0], [0], [0, 0, 1, 0], [], []>} : vector<8x128xf32>, vector<8x128xf32>, vector<8x8xf32> -> vector<8x8xf32>
    %cst_6 = arith.constant dense<0xFF800000> : vector<8xf32>
    %10 = vector.multi_reduction <maximumf>, %9, %cst_6 [1] : vector<8x8xf32> to vector<8xf32>
    %11 = vector.shape_cast %10 : vector<8xf32> to vector<8x1xf32>
    %12 = vector.broadcast %11 : vector<8x1xf32> to vector<8x8xf32>
    %13 = arith.subf %9, %12 : vector<8x8xf32>
    %14 = math.exp %13 : vector<8x8xf32>
    %cst_7 = arith.constant dense<0.000000e+00> : vector<8xf32>
    %15 = vector.multi_reduction <add>, %14, %cst_7 [1] : vector<8x8xf32> to vector<8xf32>
    %16 = vector.shape_cast %15 : vector<8xf32> to vector<8x1xf32>
    %17 = tpu.reciprocal %16 {approx = true} : vector<8x1xf32> -> vector<8x1xf32>
    %18 = vector.broadcast %17 : vector<8x1xf32> to vector<8x8xf32>
    %19 = arith.mulf %14, %18 : vector<8x8xf32>
    %cst_8 = arith.constant dense<0.000000e+00> : vector<8x32xf32>
    %20 = tpu.matmul %19, %8, %cst_8 {dimension_numbers = #tpu.dot_dimension_numbers<[1], [0], [0], [1], [0, 0, 1, 1], [], []>} : vector<8x8xf32>, vector<8x32xf32>, vector<8x32xf32> -> vector<8x32xf32>
    %c0_9 = arith.constant 0 : index
    %c0_10 = arith.constant 0 : index
    %21 = vector.load %arg4[%c0_9, %c0_10] : memref<16x32xf32, #tpu.memory_space<vmem>>, vector<8x32xf32>
    tpu.vector_store %arg4[%c0_9, %c0_10], %20 {strides = array<i32>} : memref<16x32xf32, #tpu.memory_space<vmem>>, vector<8x32xf32>,
    %22 = vector.extract_strided_slice %5 {offsets = [8, 0], sizes = [8, 128], strides = [1, 1]} : vector<16x384xf32> to vector<8x128xf32>
    %23 = vector.extract_strided_slice %5 {offsets = [8, 128], sizes = [8, 128], strides = [1, 1]} : vector<16x384xf32> to vector<8x128xf32>
    %24 = vector.extract_strided_slice %5 {offsets = [8, 256], sizes = [8, 32], strides = [1, 1]} : vector<16x384xf32> to vector<8x32xf32>
    %cst_11 = arith.constant dense<0.000000e+00> : vector<8x8xf32>
    %25 = tpu.matmul %22, %23, %cst_11 {dimension_numbers = #tpu.dot_dimension_numbers<[1], [1], [0], [0], [0, 0, 1, 0], [], []>} : vector<8x128xf32>, vector<8x128xf32>, vector<8x8xf32> -> vector<8x8xf32>
    %cst_12 = arith.constant dense<0xFF800000> : vector<8xf32>
    %26 = vector.multi_reduction <maximumf>, %25, %cst_12 [1] : vector<8x8xf32> to vector<8xf32>
    %27 = vector.shape_cast %26 : vector<8xf32> to vector<8x1xf32>
    %28 = vector.broadcast %27 : vector<8x1xf32> to vector<8x8xf32>
    %29 = arith.subf %25, %28 : vector<8x8xf32>
    %30 = math.exp %29 : vector<8x8xf32>
    %cst_13 = arith.constant dense<0.000000e+00> : vector<8xf32>
    %31 = vector.multi_reduction <add>, %30, %cst_13 [1] : vector<8x8xf32> to vector<8xf32>
    %32 = vector.shape_cast %31 : vector<8xf32> to vector<8x1xf32>
    %33 = tpu.reciprocal %32 {approx = true} : vector<8x1xf32> -> vector<8x1xf32>
    %34 = vector.broadcast %33 : vector<8x1xf32> to vector<8x8xf32>
    %35 = arith.mulf %30, %34 : vector<8x8xf32>
    %cst_14 = arith.constant dense<0.000000e+00> : vector<8x32xf32>
    %36 = tpu.matmul %35, %24, %cst_14 {dimension_numbers = #tpu.dot_dimension_numbers<[1], [0], [0], [1], [0, 0, 1, 1], [], []>} : vector<8x8xf32>, vector<8x32xf32>, vector<8x32xf32> -> vector<8x32xf32>
    %c8 = arith.constant 8 : index
    %c0_15 = arith.constant 0 : index
    %37 = vector.load %arg4[%c8, %c0_15] : memref<16x32xf32, #tpu.memory_space<vmem>>, vector<8x32xf32>
    tpu.vector_store %arg4[%c8, %c0_15], %36 {strides = array<i32>} : memref<16x32xf32, #tpu.memory_space<vmem>>, vector<8x32xf32>,
    return
  }
  func.func @transform_0(%arg0: i32) -> (i32, i32) {
    %c0_i32 = arith.constant 0 : i32
    %c0_i32_0 = arith.constant 0 : i32
    return %arg0, %c0_i32 : i32, i32
  }
  func.func @transform_1(%arg0: i32) -> (i32, i32) {
    %c0_i32 = arith.constant 0 : i32
    %c0_i32_0 = arith.constant 0 : i32
    %c0_i32_1 = arith.constant 0 : i32
    return %c0_i32, %c0_i32_0 : i32, i32
  }
  func.func @transform_2(%arg0: i32) -> (i32, i32) {
    %c0_i32 = arith.constant 0 : i32
    %c0_i32_0 = arith.constant 0 : i32
    %c0_i32_1 = arith.constant 0 : i32
    return %c0_i32, %c0_i32_0 : i32, i32
  }
  func.func @transform_3(%arg0: i32) -> (i32, i32) {
    %c0_i32 = arith.constant 0 : i32
    %c0_i32_0 = arith.constant 0 : i32
    return %arg0, %c0_i32 : i32, i32
  }
}

</mosaic_0001>

<llo_original>
// kernel: tpu_custom_call.1
$region0: #{tpu_custom_call.1}
  #allocation0 [shape = 'u32[]', space=smem, size = 0x4, offset = 0x4, fixed_abs, tag = 'smem constant byte address 0x4 - core index']
  #allocation1 [shape = 'u32[72,128]{1,0:T(1,128)}', space=vmem, size = 0x9000, scoped, tag = 'internal scratch']
  %s0 = inlined_call_operand.hbm [shape: f32[16,32], index: 0, kind: input, shape index: {}]
  %s1 = inlined_call_operand.hbm [shape: f32[32,384], index: 1, kind: input, shape index: {}]
  %s2 = inlined_call_operand.hbm [shape: f32[1,384], index: 2, kind: input, shape index: {}]
  %s3 = inlined_call_operand.hbm [shape: f32[16,32], index: 3, kind: output, shape index: {}]
  %s4 = sld [smem:[#allocation0]]
  $region34: #{tpu_custom_call.1} parent=0
    _
  %s6 = ssub.s32 1, %s4
  %s7 = scalar_select 0, %s6, %s4
  $region1: #{tpu_custom_call.1} parent=0
    #allocation2 [shape = 'u8[8192]{0}', space=vmem, size = 0x2000, scoped, tag = 'input window, operand 0, single buffered']
    #allocation3 [shape = 's32[1]{0}', space=sflag, size = 0x4, scoped, tag = 'scoped memory for tpu_custom_call.1']
    #allocation4 [shape = 's32[1]{0}', space=sflag, size = 0x4, scoped, tag = 'scoped memory for tpu_custom_call.1']
    #allocation5 [shape = 'u8[49152]{0}', space=vmem, size = 0xc000, scoped, tag = 'input window, operand 1, single buffered']
    #allocation6 [shape = 's32[1]{0}', space=sflag, size = 0x4, scoped, tag = 'scoped memory for tpu_custom_call.1']
    #allocation7 [shape = 'u8[1536]{0}', space=vmem, size = 0x800, scoped, tag = 'input window, operand 2, single buffered']
    #allocation8 [shape = 'u8[8192]{0}', space=vmem, size = 0x2000, scoped, tag = 'output window, operand 0, single buffered']
    %8 = vsyncpa [#allocation3], 0
    %9 = vsyncpa [#allocation6], 0
    %10 = vsyncpa [#allocation4], 0
    // Predicated region
    $region2: #{tpu_custom_call.1} parent=1 // pred_check
      _
    $region3: #{tpu_custom_call.1} parent=1 // pred_check_branch
      %12 = sbr.rel (0) target = $region5
    $region4: #{tpu_custom_call.1} parent=1 // pred_region
      %14 = vsyncadd [#allocation3], 0
      %s15 = sshll.u32 %s0, 4
      %s16 = int_to_ptr.hbm [resolvable:$true] %s15
      %s17 = sshll.u32 [#allocation2], 4
      %s18 = int_to_ptr.vmem [resolvable:$true] %s17
      %23 = dma.hbm_to_vmem [thread:$0]  %s16, 256, %s18, [#allocation3], 128, 128, 8
    $region5: #{tpu_custom_call.1} parent=1 // pred_fallthru
      _
    // Predicated region
    $region6: #{tpu_custom_call.1} parent=1 // pred_check
      _
    $region7: #{tpu_custom_call.1} parent=1 // pred_check_branch
      %25 = sbr.rel (0) target = $region9
    $region8: #{tpu_custom_call.1} parent=1 // pred_region
      %27 = vsyncadd [#allocation6], 0
      %s28 = sshll.u32 %s1, 4
      %s29 = int_to_ptr.hbm [resolvable:$true] %s28
      %s30 = sshll.u32 [#allocation5], 4
      %s31 = int_to_ptr.vmem [resolvable:$true] %s30
      %36 = dma.hbm_to_vmem [thread:$0]  %s29, 1536, %s31, [#allocation6], 384, 384, 24
    $region9: #{tpu_custom_call.1} parent=1 // pred_fallthru
      _
    // Predicated region
    $region10: #{tpu_custom_call.1} parent=1 // pred_check
      _
    $region11: #{tpu_custom_call.1} parent=1 // pred_check_branch
      %38 = sbr.rel (0) target = $region13
    $region12: #{tpu_custom_call.1} parent=1 // pred_region
      %40 = vsyncadd [#allocation6], 0
      %s42 = sshll.u32 %s2, 4
      %s43 = int_to_ptr.hbm [resolvable:$true] %s42
      %s44 = sshll.u32 [#allocation7], 4
      %s45 = int_to_ptr.vmem [resolvable:$true] %s44
      %47 = dma.hbm_to_vmem [thread:$0]  %s43, 48, %s45, [#allocation6]
    $region13: #{tpu_custom_call.1} parent=1 // pred_fallthru
      _
    // Predicated region
    $region14: #{tpu_custom_call.1} parent=1 // pred_check
      _
    $region15: #{tpu_custom_call.1} parent=1 // pred_check_branch
      %49 = sbr.rel (0) target = $region17
    $region16: #{tpu_custom_call.1} parent=1 // pred_region
      %51 = dma.done [#allocation3], 256
    $region17: #{tpu_custom_call.1} parent=1 // pred_fallthru
      _
    // Predicated region
    $region18: #{tpu_custom_call.1} parent=1 // pred_check
      _
    $region19: #{tpu_custom_call.1} parent=1 // pred_check_branch
      %53 = sbr.rel (0) target = $region21
    $region20: #{tpu_custom_call.1} parent=1 // pred_region
      %55 = dma.done [#allocation6], 1536
    $region21: #{tpu_custom_call.1} parent=1 // pred_fallthru
      _
    // Predicated region
    $region22: #{tpu_custom_call.1} parent=1 // pred_check
      _
    $region23: #{tpu_custom_call.1} parent=1 // pred_check_branch
      %57 = sbr.rel (0) target = $region25
    $region24: #{tpu_custom_call.1} parent=1 // pred_region
      %59 = dma.done [#allocation6], 48
    $region25: #{tpu_custom_call.1} parent=1 // pred_fallthru
      _
    %v60 = vld [vmem:[#allocation2] sm:$0xff]
    %v61 = vld [vmem:[#allocation2 + $0x8] sm:$0xff]
    %v62 = vld [vmem:[#allocation5] sm:$0xff]
    %v63 = vld [vmem:[#allocation5 + $0x8] sm:$0xff]
    %v64 = vld [vmem:[#allocation5 + $0x10] sm:$0xff]
    %v65 = vld [vmem:[#allocation5 + $0x18] sm:$0xff]
    %v66 = vld [vmem:[#allocation5 + $0x20] sm:$0xff]
    %v67 = vld [vmem:[#allocation5 + $0x28] sm:$0xff]
    %v68 = vld [vmem:[#allocation5 + $0x30] sm:$0xff]
    %v69 = vld [vmem:[#allocation5 + $0x38] sm:$0xff]
    %v70 = vld [vmem:[#allocation5 + $0x40] sm:$0xff]
    %v71 = vld [vmem:[#allocation5 + $0x48] sm:$0xff]
    %v72 = vld [vmem:[#allocation5 + $0x50] sm:$0xff]
    %v73 = vld [vmem:[#allocation5 + $0x58] sm:$0xff]
    %v74 = vld [vmem:[#allocation7] sm:$0x7]
    %v76 = vperm.slane %v74, 0
    %v77 = vperm.slane %v74, 1
    %v78 = vperm.slane %v74, 2
    %vm82 = vcmask 261120
    %v84 = vsel %vm82, %v60, 0
    %v87 = vsel %vm82, %v61, 0
    %89 = vmatpush.msra.mxu0 0.0
    %90 = vmatpush.msra.mxu0 0.0
    %91 = vmatpush.msra.mxu0 0.0
    %92 = vmatpush.msra.mxu0 0.0
    %93 = vmatpush.msra.mxu0 0.0
    %94 = vmatpush.msra.mxu0 0.0
    %95 = vmatpush.msra.mxu0 0.0
    %96 = vmatpush.msra.mxu0 0.0
    %97 = vmatpush.msra.mxu0 0.0
    %98 = vmatpush.msra.mxu0 0.0
    %99 = vmatpush.msra.mxu0 0.0
    %100 = vmatpush.msra.mxu0 0.0
    %101 = vmatpush.msra.mxu0 %v71
    %102 = vmatpush.msra.mxu0 %v68
    %103 = vmatpush.msra.mxu0 %v65
    %104 = vmatpush.msra.mxu0 %v62
    %105 = vmatmul.f32.gmra.mxu0 %v84
    %v106 = vpop.f32.mrf.mxu0
    %v107 = vadd.f32 %v76, %v106
    %108 = vmatmul.f32.gmra.mxu0 %v87
    %v109 = vpop.f32.mrf.mxu0
    %v110 = vadd.f32 %v76, %v109
    %111 = vdwg.mxu0
    %112 = vmatpush.msra.mxu0 0.0
    %113 = vmatpush.msra.mxu0 0.0
    %114 = vmatpush.msra.mxu0 0.0
    %115 = vmatpush.msra.mxu0 0.0
    %116 = vmatpush.msra.mxu0 0.0
    %117 = vmatpush.msra.mxu0 0.0
    %118 = vmatpush.msra.mxu0 0.0
    %119 = vmatpush.msra.mxu0 0.0
    %120 = vmatpush.msra.mxu0 0.0
    %121 = vmatpush.msra.mxu0 0.0
    %122 = vmatpush.msra.mxu0 0.0
    %123 = vmatpush.msra.mxu0 0.0
    %124 = vmatpush.msra.mxu0 %v72
    %125 = vmatpush.msra.mxu0 %v69
    %126 = vmatpush.msra.mxu0 %v66
    %127 = vmatpush.msra.mxu0 %v63
    %128 = vmatmul.f32.gmra.mxu0 %v84
    %v129 = vpop.f32.mrf.mxu0
    %v130 = vadd.f32 %v77, %v129
    %131 = vmatmul.f32.gmra.mxu0 %v87
    %v132 = vpop.f32.mrf.mxu0
    %v133 = vadd.f32 %v77, %v132
    %134 = vdwg.mxu0
    %135 = vmatpush.msra.mxu0 0.0
    %136 = vmatpush.msra.mxu0 0.0
    %137 = vmatpush.msra.mxu0 0.0
    %138 = vmatpush.msra.mxu0 0.0
    %139 = vmatpush.msra.mxu0 0.0
    %140 = vmatpush.msra.mxu0 0.0
    %141 = vmatpush.msra.mxu0 0.0
    %142 = vmatpush.msra.mxu0 0.0
    %143 = vmatpush.msra.mxu0 0.0
    %144 = vmatpush.msra.mxu0 0.0
    %145 = vmatpush.msra.mxu0 0.0
    %146 = vmatpush.msra.mxu0 0.0
    %147 = vmatpush.msra.mxu0 %v73
    %148 = vmatpush.msra.mxu0 %v70
    %149 = vmatpush.msra.mxu0 %v67
    %150 = vmatpush.msra.mxu0 %v64
    %151 = vmatmul.f32.gmra.mxu0 %v84
    %v152 = vpop.f32.mrf.mxu0
    %v153 = vadd.f32 %v78, %v152
    %154 = vmatmul.f32.gmra.mxu0 %v87
    %v155 = vpop.f32.mrf.mxu0
    %v156 = vadd.f32 %v78, %v155
    %157 = vdwg.mxu0
    %158 = vmatpush.xpose.msra.mxu0 0.0
    %159 = vmatpush.xpose.msra.mxu0 0.0
    %160 = vmatpush.xpose.msra.mxu0 0.0
    %161 = vmatpush.xpose.msra.mxu0 0.0
    %162 = vmatpush.xpose.msra.mxu0 0.0
    %163 = vmatpush.xpose.msra.mxu0 0.0
    %164 = vmatpush.xpose.msra.mxu0 0.0
    %165 = vmatpush.xpose.msra.mxu0 0.0
    %166 = vmatpush.xpose.msra.mxu0 0.0
    %167 = vmatpush.xpose.msra.mxu0 0.0
    %168 = vmatpush.xpose.msra.mxu0 0.0
    %169 = vmatpush.xpose.msra.mxu0 0.0
    %170 = vmatpush.xpose.msra.mxu0 0.0
    %171 = vmatpush.xpose.msra.mxu0 0.0
    %172 = vmatpush.xpose.msra.mxu0 0.0
    %173 = vmatpush.xpose.msra.mxu0 %v130
    %174 = vmatmul.f32.gmra.mxu0 %v107
    %v175 = vpop.f32.mrf.mxu0
    %v176 = vadd.f32 0.0, %v175
    %177 = vdwg.mxu0
    %vm178 = vcmask 64512
    %v179 = vsel %vm178, %v176, -inf
    %180 = vmax.xlane.f32.xlu0 %v179
    %v181 = vpop.xlane.xlu0 %180
    %v182 = vsub.f32 %v176, %v181
    %v183 = vmul.f32 %v182, 1.442695
    %v184 = vpow.pop %v183
    %v185 = vsel %vm178, %v184, 0.0
    %186 = vadd.xlane.f32.xlu0 %v185
    %v187 = vpop.xlane.xlu0 %186
    %v188 = vrcp.pop %v187
    %v189 = vmul.f32 %v184, %v188
    %v191 = vsel %vm178, %v189, 0
    %193 = vmatpush.msra.mxu0 0.0
    %194 = vmatpush.msra.mxu0 0.0
    %195 = vmatpush.msra.mxu0 0.0
    %196 = vmatpush.msra.mxu0 0.0
    %197 = vmatpush.msra.mxu0 0.0
    %198 = vmatpush.msra.mxu0 0.0
    %199 = vmatpush.msra.mxu0 0.0
    %200 = vmatpush.msra.mxu0 0.0
    %201 = vmatpush.msra.mxu0 0.0
    %202 = vmatpush.msra.mxu0 0.0
    %203 = vmatpush.msra.mxu0 0.0
    %204 = vmatpush.msra.mxu0 0.0
    %205 = vmatpush.msra.mxu0 0.0
    %206 = vmatpush.msra.mxu0 0.0
    %207 = vmatpush.msra.mxu0 0.0
    %208 = vmatpush.msra.mxu0 %v153
    %209 = vmatmul.f32.gmra.mxu0 %v191
    %v210 = vpop.f32.mrf.mxu0
    %v211 = vadd.f32 0.0, %v210
    %212 = vdwg.mxu0
    %213 = vst.msk [vmem:[#allocation8] sm:$0xff] %vm82, %v211
    %214 = vmatpush.xpose.msra.mxu0 0.0
    %215 = vmatpush.xpose.msra.mxu0 0.0
    %216 = vmatpush.xpose.msra.mxu0 0.0
    %217 = vmatpush.xpose.msra.mxu0 0.0
    %218 = vmatpush.xpose.msra.mxu0 0.0
    %219 = vmatpush.xpose.msra.mxu0 0.0
    %220 = vmatpush.xpose.msra.mxu0 0.0
    %221 = vmatpush.xpose.msra.mxu0 0.0
    %222 = vmatpush.xpose.msra.mxu0 0.0
    %223 = vmatpush.xpose.msra.mxu0 0.0
    %224 = vmatpush.xpose.msra.mxu0 0.0
    %225 = vmatpush.xpose.msra.mxu0 0.0
    %226 = vmatpush.xpose.msra.mxu0 0.0
    %227 = vmatpush.xpose.msra.mxu0 0.0
    %228 = vmatpush.xpose.msra.mxu0 0.0
    %229 = vmatpush.xpose.msra.mxu0 %v133
    %230 = vmatmul.f32.gmra.mxu0 %v110
    %v231 = vpop.f32.mrf.mxu0
    %v232 = vadd.f32 0.0, %v231
    %233 = vdwg.mxu0
    %v234 = vsel %vm178, %v232, -inf
    %235 = vmax.xlane.f32.xlu0 %v234
    %v236 = vpop.xlane.xlu0 %235
    %v237 = vsub.f32 %v232, %v236
    %v238 = vmul.f32 %v237, 1.442695
    %v239 = vpow.pop %v238
    %v240 = vsel %vm178, %v239, 0.0
    %241 = vadd.xlane.f32.xlu0 %v240
    %v242 = vpop.xlane.xlu0 %241
    %v243 = vrcp.pop %v242
    %v244 = vmul.f32 %v239, %v243
    %v246 = vsel %vm178, %v244, 0
    %248 = vmatpush.msra.mxu0 0.0
    %249 = vmatpush.msra.mxu0 0.0
    %250 = vmatpush.msra.mxu0 0.0
    %251 = vmatpush.msra.mxu0 0.0
    %252 = vmatpush.msra.mxu0 0.0
    %253 = vmatpush.msra.mxu0 0.0
    %254 = vmatpush.msra.mxu0 0.0
    %255 = vmatpush.msra.mxu0 0.0
    %256 = vmatpush.msra.mxu0 0.0
    %257 = vmatpush.msra.mxu0 0.0
    %258 = vmatpush.msra.mxu0 0.0
    %259 = vmatpush.msra.mxu0 0.0
    %260 = vmatpush.msra.mxu0 0.0
    %261 = vmatpush.msra.mxu0 0.0
    %262 = vmatpush.msra.mxu0 0.0
    %263 = vmatpush.msra.mxu0 %v156
    %264 = vmatmul.f32.gmra.mxu0 %v246
    %v265 = vpop.f32.mrf.mxu0
    %v266 = vadd.f32 0.0, %v265
    %267 = vdwg.mxu0
    %268 = vst.msk [vmem:[#allocation8 + $0x8] sm:$0xff] %vm82, %v266
    // Predicated region
    $region26: #{tpu_custom_call.1} parent=1 // pred_check
      _
    $region27: #{tpu_custom_call.1} parent=1 // pred_check_branch
      %270 = sbr.rel (0) target = $region29
    $region28: #{tpu_custom_call.1} parent=1 // pred_region
      %272 = vsyncadd [#allocation4], 0
      %s273 = sshll.u32 [#allocation8], 4
      %s274 = int_to_ptr.vmem [resolvable:$true] %s273
      %s275 = sshll.u32 %s3, 4
      %s276 = int_to_ptr.hbm [resolvable:$true] %s275
      %281 = dma.vmem_to_hbm [thread:$0]  %s274, 256, %s276, [#allocation4], 128, 128, 8
    $region29: #{tpu_custom_call.1} parent=1 // pred_fallthru
      _
    // Predicated region
    $region30: #{tpu_custom_call.1} parent=1 // pred_check
      _
    $region31: #{tpu_custom_call.1} parent=1 // pred_check_branch
      %283 = sbr.rel (0) target = $region33
    $region32: #{tpu_custom_call.1} parent=1 // pred_region
      %285 = dma.done [#allocation4], 256
    $region33: #{tpu_custom_call.1} parent=1 // pred_fallthru
      _
    %286 = vsyncpa [#allocation3], 1
    %287 = vsyncpa [#allocation6], 1
    %288 = vsyncpa [#allocation4], 1

</llo_original>
